<compile_context>
chip_gen: v7x
topology: tpu7x:2x2x1
jax: 0.10.0
libtpu: 0.0.40
codegen_flags: <defaults>
</compile_context>

<pallas_src>
import functools
import math

import jax
import jax.numpy as jnp
from jax import lax
from jax.experimental import pallas as pl
from jax.experimental.pallas import tpu as pltpu


_LANE = 128
_SUBLANE = 8


# ---------------------------------------------------------------------------
# Per-generation sizing / small helpers
# ---------------------------------------------------------------------------
def _vmem_budget():
    """Returns (per-input-block byte budget, vmem_limit_bytes) for this chip."""
    vmem_cap = 64 * 1024 * 1024            # conservative default (v7x: 64 MiB/TC)
    try:
        vmem_cap = int(pltpu.get_tpu_info().vmem_capacity_bytes)
    except Exception:
        pass
    if vmem_cap >= 96 * 1024 * 1024:       # v5e / v6e: 128 MiB physical VMEM
        return 14 * 1024 * 1024, 80 * 1024 * 1024
    # v7x: 64 MiB per TensorCore -> smaller blocks, tighter scoped limit
    return 10 * 1024 * 1024, 48 * 1024 * 1024


def _sublane_pack(dtype):
    """Rows per sublane group: 8 for 32-bit, 16 for 16-bit, 32 for 8-bit."""
    itemsize = jnp.dtype(dtype).itemsize
    return max(_SUBLANE, _SUBLANE * (4 // max(itemsize, 1)))


def _round_down(x, m):
    return (x // m) * m


def _pick_tile(dim, cap, align):
    """Block size for `dim`: the full dim if it fits under `cap`; otherwise the
    largest align-multiple divisor of dim <= cap (avoids masked edges);
    otherwise the largest align multiple <= cap (edges handled by masking)."""
    if dim <= cap:
        return dim
    t = _round_down(cap, align)
    while t >= align:
        if dim % t == 0:
            return t
        t -= align
    return max(align, _round_down(cap, align))


def _pick_slab(t_r, pack):
    """Rows widened per step in the widening kernel: a multiple of the dtype's
    sublane pack that divides t_r (falls back to the whole tile)."""
    if t_r <= 4 * pack:
        return t_r
    for mult in (8, 4, 2, 1):
        s = mult * pack
        if t_r % s == 0:
            return s
    return t_r


def _out_dtype(dtype):
    if jnp.issubdtype(dtype, jnp.floating):
        return dtype
    # TODO(synk): torch.sum promotes integer/bool inputs to int64; TPU JAX
    # defaults to 32-bit, so integer/bool inputs are accumulated/returned as int32.
    return jnp.int32


def _acc_dtype(dtype):
    if jnp.issubdtype(dtype, jnp.floating):
        return jnp.float32
    return jnp.int32


# ---------------------------------------------------------------------------
# Kernels
# ---------------------------------------------------------------------------
def _reduce_mid_direct_kernel(x_ref, o_ref, *, r_dim, t_r, split, r_grid):
    """acc dtype == out dtype == in dtype: accumulate directly into the
    resident output block (no scratch, no zero-init pass)."""
    if split:
        r_local = pl.program_id(1)
        ridx = pl.program_id(0) * r_grid + r_local
    else:
        r_local = pl.program_id(2)
        ridx = r_local

    x = x_ref[...]
    if (r_dim % t_r) != 0:                 # partial reduce tile: mask garbage rows
        row = lax.broadcasted_iota(jnp.int32, x.shape, 1)
        x = jnp.where((ridx * t_r + row) < r_dim, x, jnp.zeros_like(x))
    part = jnp.sum(x, axis=1)

    @pl.when(r_local == 0)
    def _():
        o_ref[...] = part

    @pl.when(r_local != 0)
    def _():
        o_ref[...] += part


def _reduce_mid_acc_kernel(x_ref, o_ref, acc_ref, *, r_dim, t_r, split, r_grid, slab):
    """Narrow / integer inputs: widen slab-by-slab into a wide VMEM accumulator
    (bounded vreg live ranges) and cast once on the last reduce step."""
    if split:
        r_local = pl.program_id(1)
        ridx = pl.program_id(0) * r_grid + r_local
    else:
        r_local = pl.program_id(2)
        ridx = r_local

    masked = (r_dim % t_r) != 0
    n_slabs = t_r // slab

    def slab_sum(s):
        start = pl.multiple_of(s * slab, slab)
        chunk = x_ref[:, pl.ds(start, slab), :].astype(acc_ref.dtype)
        if masked:
            row = lax.broadcasted_iota(jnp.int32, chunk.shape, 1)
            chunk = jnp.where((ridx * t_r + start + row) < r_dim,
                              chunk, jnp.zeros_like(chunk))
        return jnp.sum(chunk, axis=1)

    @pl.when(r_local == 0)
    def _():
        acc_ref[...] = slab_sum(0)

    @pl.when(r_local != 0)
    def _():
        acc_ref[...] += slab_sum(0)

    if n_slabs > 1:
        def body(s, carry):
            acc_ref[...] += slab_sum(s)
            return carry
        lax.fori_loop(1, n_slabs, body, 0, unroll=n_slabs <= 8)

    @pl.when(r_local == r_grid - 1)
    def _():
        o_ref[...] = acc_ref[...].astype(o_ref.dtype)


def _reduce_last_kernel(x_ref, o_ref, acc_ref, *, r_dim, t_r):
    """Reduce over the lane (last) axis with an accumulator across r-tiles."""
    r = pl.program_id(1)
    x = x_ref[...].astype(acc_ref.dtype)
    if (r_dim % t_r) != 0:                 # partial reduce tile: mask garbage lanes
        lane = lax.broadcasted_iota(jnp.int32, x.shape, 1)
        x = jnp.where((r * t_r + lane) < r_dim, x, jnp.zeros_like(x))
    part = jnp.sum(x, axis=-1, keepdims=True)

    @pl.when(r == 0)
    def _():
        acc_ref[...] = part

    @pl.when(r != 0)
    def _():
        acc_ref[...] += part

    @pl.when(r == pl.num_programs(1) - 1)
    def _():
        o_ref[...] = acc_ref[...].astype(o_ref.dtype)


# ---------------------------------------------------------------------------
# pallas_call wrappers
# ---------------------------------------------------------------------------
def _reduce_sum_middle(x3, out_dt, acc_dt):
    """Sum a (outer, R, inner) array over its middle axis -> (outer, inner)."""
    outer, r_dim, inner = x3.shape
    in_dt = x3.dtype
    itemsize = jnp.dtype(in_dt).itemsize
    out_itemsize = jnp.dtype(out_dt).itemsize
    acc_itemsize = jnp.dtype(acc_dt).itemsize
    pack_in = _sublane_pack(in_dt)
    pack_out = _sublane_pack(out_dt)
    budget, vmem_limit = _vmem_budget()

    direct = (jnp.dtype(in_dt) == jnp.dtype(out_dt)) and \
             (jnp.dtype(in_dt) == jnp.dtype(acc_dt))

    # ---- tile selection: lane axis first (DMA contiguity), then reduce rows,
    # ---- then the outer axis with whatever budget is left.
    t_o_min = min(outer, pack_out)
    cap_i = max(_LANE, budget // max(1, t_o_min * pack_in * itemsize))
    t_i = _pick_tile(inner, cap_i, _LANE)
    cap_r = max(pack_in, budget // max(1, t_o_min * t_i * itemsize))
    t_r = _pick_tile(r_dim, cap_r, pack_in)
    cap_o = max(t_o_min, budget // max(1, t_r * t_i * itemsize))
    t_o = _pick_tile(outer, cap_o, pack_out)

    # ---- make sure the whole working set (double-buffered input + output +
    # ---- accumulator scratch) fits under the per-generation VMEM limit.
    limit = int(0.85 * vmem_limit)

    def working_set(to, tr, ti):
        in_b = to * tr * ti * itemsize
        out_b = to * ti * out_itemsize
        acc_b = 0 if direct else to * ti * acc_itemsize
        return 2 * in_b + 2 * out_b + acc_b

    for _ in range(64):
        if working_set(t_o, t_r, t_i) <= limit:
            break
        if t_o > t_o_min:
            t_o = max(t_o_min, _round_down(t_o // 2, pack_out) or t_o_min)
        elif t_i > _LANE:
            t_i = max(_LANE, _round_down(t_i // 2, _LANE))
        elif t_r > pack_in:
            t_r = max(pack_in, _round_down(t_r // 2, pack_in))
        else:
            break

    n_o = pl.cdiv(outer, t_o)
    n_i = pl.cdiv(inner, t_i)
    n_r = pl.cdiv(r_dim, t_r)

    # Tall-skinny reductions: give both v7x TensorCores work by splitting the
    # reduce axis into two "parallel" halves, combined with one tiny XLA add.
    split = (n_o * n_i == 1) and (n_r >= 4) and (n_r % 2 == 0)
    half = n_r // 2 if split else n_r

    cost = pl.CostEstimate(
        flops=outer * inner * max(r_dim - 1, 0),
        transcendentals=0,
        bytes_accessed=(outer * r_dim * inner * itemsize
                        + (2 if split else 1) * outer * inner * out_itemsize),
    )

    common = dict(r_dim=r_dim, t_r=t_r, split=split, r_grid=half)
    if direct:
        kernel = functools.partial(_reduce_mid_direct_kernel, **common)
        scratch = []
    else:
        slab = _pick_slab(t_r, pack_in)
        kernel = functools.partial(_reduce_mid_acc_kernel, slab=slab, **common)
        scratch = [pltpu.VMEM((t_o, t_i), acc_dt)]

    if split:
        grid = (2, half)
        in_specs = [pl.BlockSpec((t_o, t_r, t_i),
                                 lambda p, r, h=half: (0, p * h + r, 0))]
        out_specs = pl.BlockSpec((None, t_o, t_i), lambda p, r: (p, 0, 0))
        out_shape = jax.ShapeDtypeStruct((2, outer, inner), out_dt)
        dims = ("parallel", "arbitrary")
    else:
        grid = (n_o, n_i, n_r)
        in_specs = [pl.BlockSpec((t_o, t_r, t_i), lambda o, i, r: (o, r, i))]
        out_specs = pl.BlockSpec((t_o, t_i), lambda o, i, r: (o, i))
        out_shape = jax.ShapeDtypeStruct((outer, inner), out_dt)
        dims = ("parallel", "parallel", "arbitrary")

    out = pl.pallas_call(
        kernel,
        out_shape=out_shape,
        grid_spec=pltpu.PrefetchScalarGridSpec(
            num_scalar_prefetch=0,
            grid=grid,
            in_specs=in_specs,
            out_specs=out_specs,
            scratch_shapes=scratch,
        ),
        compiler_params=pltpu.CompilerParams(
            dimension_semantics=dims,
            vmem_limit_bytes=vmem_limit,
        ),
        cost_estimate=cost,
    )(x3)

    if split:
        out = out[0] + out[1]      # trivial XLA add combining the two TC partials
    return out


def _reduce_sum_last(x2, out_dt, acc_dt):
    """Sum a (outer, R) array over its last axis -> (outer, 1)."""
    outer, r_dim = x2.shape
    in_dt = x2.dtype
    itemsize = jnp.dtype(in_dt).itemsize
    out_itemsize = jnp.dtype(out_dt).itemsize
    acc_itemsize = jnp.dtype(acc_dt).itemsize
    pack_in = _sublane_pack(in_dt)
    budget, vmem_limit = _vmem_budget()

    t_o_min = min(outer, pack_in)
    # Reduce axis is the lane axis: prefer the full row (one contiguous run).
    cap_r = max(_LANE, budget // max(1, t_o_min * itemsize))
    t_r = _pick_tile(r_dim, cap_r, _LANE)
    cap_o = max(t_o_min, budget // max(1, t_r * itemsize))
    t_o = _pick_tile(outer, cap_o, pack_in)

    limit = int(0.85 * vmem_limit)

    def working_set(to, tr):
        return 2 * to * tr * itemsize + 2 * to * out_itemsize + to * acc_itemsize

    for _ in range(64):
        if working_set(t_o, t_r) <= limit:
            break
        if t_o > t_o_min:
            t_o = max(t_o_min, _round_down(t_o // 2, pack_in) or t_o_min)
        elif t_r > _LANE:
            t_r = max(_LANE, _round_down(t_r // 2, _LANE))
        else:
            break

    n_o = pl.cdiv(outer, t_o)
    n_r = pl.cdiv(r_dim, t_r)

    cost = pl.CostEstimate(
        flops=outer * max(r_dim - 1, 0),
        transcendentals=0,
        bytes_accessed=outer * r_dim * itemsize + outer * out_itemsize,
    )

    return pl.pallas_call(
        functools.partial(_reduce_last_kernel, r_dim=r_dim, t_r=t_r),
        out_shape=jax.ShapeDtypeStruct((outer, 1), out_dt),
        grid_spec=pltpu.PrefetchScalarGridSpec(
            num_scalar_prefetch=0,
            grid=(n_o, n_r),
            in_specs=[pl.BlockSpec((t_o, t_r), lambda o, r: (o, r))],
            out_specs=pl.BlockSpec((t_o, 1), lambda o, r: (o, 0)),
            scratch_shapes=[pltpu.VMEM((t_o, 1), acc_dt)],
        ),
        compiler_params=pltpu.CompilerParams(
            dimension_semantics=("parallel", "arbitrary"),
            vmem_limit_bytes=vmem_limit,
        ),
        cost_estimate=cost,
    )(x2)


# ---------------------------------------------------------------------------
# Public wrapper (mirrors the PyTorch Model.forward)
# ---------------------------------------------------------------------------
def reduce_sum(x, axis):
    """torch.sum(x, axis, keepdim=False) semantics; the reduction runs in Pallas."""
    ndim = x.ndim
    ax = axis % ndim
    shape = x.shape
    outer = math.prod(shape[:ax])
    r_dim = shape[ax]
    inner = math.prod(shape[ax + 1:])
    out_shape = shape[:ax] + shape[ax + 1:]

    out_dt = _out_dtype(x.dtype)
    acc_dt = _acc_dtype(x.dtype)

    if inner > 1:
        # Free contiguous reshape -> (outer, R, inner); reduce the middle axis.
        out = _reduce_sum_middle(x.reshape(outer, r_dim, inner), out_dt, acc_dt)
    else:
        # Reduce axis is (equivalent to) the last axis: (outer, R) -> (outer, 1).
        out = _reduce_sum_last(x.reshape(outer, r_dim), out_dt, acc_dt)
    return out.reshape(out_shape)


class Model:
    """Mirror of the PyTorch Model: forward(x) = sum over `axis`, keepdim=False."""

    def __init__(self, axis):
        self.axis = axis

    def __call__(self, x):
        return reduce_sum(x, self.axis)


if __name__ == "__main__":
    key = jax.random.PRNGKey(0)
    x = jax.random.normal(key, (2, 4, 16, 16), dtype=jnp.float32)

    # Model(axis=1): sum over the channel dimension of an NCHW tensor.
    model = Model(axis=1)
    y = jax.block_until_ready(model(x))
    y_ref = jnp.sum(x, axis=1)
    assert y.shape == y_ref.shape, (y.shape, y_ref.shape)
    assert jnp.allclose(y, y_ref, atol=1e-5, rtol=1e-5)

    # Also exercise the last-axis (inner == 1) path.
    y2 = jax.block_until_ready(reduce_sum(x, -1))
    y2_ref = jnp.sum(x, axis=-1)
    assert y2.shape == y2_ref.shape, (y2.shape, y2_ref.shape)
    assert jnp.allclose(y2, y2_ref, atol=1e-5, rtol=1e-5)

    print("KERNEL_OK")
</pallas_src>

<mosaic_0001>
module attributes {stable_mosaic.version = 11 : i64} {
  func.func @_reduce_mid_direct_kernel(%arg0: i32, %arg1: i32, %arg2: i32, %arg3: memref<2x4x256xf32, #tpu.memory_space<vmem>>, %arg4: memref<2x256xf32, #tpu.memory_space<vmem>>) attributes {dimension_semantics = [#tpu.dimension_semantics<parallel>, #tpu.dimension_semantics<parallel>, #tpu.dimension_semantics<arbitrary>], iteration_bounds = array<i64: 1, 1, 1>, scalar_prefetch = 0 : i64, scratch_operands = 0 : i64, tpu.core_type = #tpu.core_type<tc>, window_params = [{transform_indices = @transform_0, window_bounds = array<i64: 2, 4, 256>}, {transform_indices = @transform_1, window_bounds = array<i64: 2, 256>}]} {
    %c0 = arith.constant 0 : index
    %c0_0 = arith.constant 0 : index
    %c0_1 = arith.constant 0 : index
    %0 = vector.load %arg3[%c0, %c0_0, %c0_1] : memref<2x4x256xf32, #tpu.memory_space<vmem>>, vector<2x4x256xf32>
    %cst = arith.constant dense<0.000000e+00> : vector<2x256xf32>
    %1 = vector.multi_reduction <add>, %0, %cst [1] : vector<2x4x256xf32> to vector<2x256xf32>
    %c0_i32 = arith.constant 0 : i32
    %2 = arith.cmpi eq, %arg2, %c0_i32 : i32
    %3 = arith.extui %2 : i1 to i32
    %c0_i32_2 = arith.constant 0 : i32
    %4 = arith.cmpi ne, %3, %c0_i32_2 : i32
    scf.if %4 {
      %c0_5 = arith.constant 0 : index
      %c0_6 = arith.constant 0 : index
      %8 = vector.load %arg4[%c0_5, %c0_6] : memref<2x256xf32, #tpu.memory_space<vmem>>, vector<2x256xf32>
      tpu.vector_store %arg4[%c0_5, %c0_6], %1 {strides = array<i32>} : memref<2x256xf32, #tpu.memory_space<vmem>>, vector<2x256xf32>,
    } else {
    }
    %c0_i32_3 = arith.constant 0 : i32
    %5 = arith.cmpi ne, %arg2, %c0_i32_3 : i32
    %6 = arith.extui %5 : i1 to i32
    %c0_i32_4 = arith.constant 0 : i32
    %7 = arith.cmpi ne, %6, %c0_i32_4 : i32
    scf.if %7 {
      %c0_5 = arith.constant 0 : index
      %c0_6 = arith.constant 0 : index
      %8 = vector.load %arg4[%c0_5, %c0_6] : memref<2x256xf32, #tpu.memory_space<vmem>>, vector<2x256xf32>
      %9 = arith.addf %8, %1 : vector<2x256xf32>
      %c0_7 = arith.constant 0 : index
      %c0_8 = arith.constant 0 : index
      %10 = vector.load %arg4[%c0_7, %c0_8] : memref<2x256xf32, #tpu.memory_space<vmem>>, vector<2x256xf32>
      tpu.vector_store %arg4[%c0_7, %c0_8], %9 {strides = array<i32>} : memref<2x256xf32, #tpu.memory_space<vmem>>, vector<2x256xf32>,
    } else {
    }
    return
  }
  func.func @transform_0(%arg0: i32, %arg1: i32, %arg2: i32) -> (i32, i32, i32) {
    %c0_i32 = arith.constant 0 : i32
    return %arg0, %arg2, %arg1 : i32, i32, i32
  }
  func.func @transform_1(%arg0: i32, %arg1: i32, %arg2: i32) -> (i32, i32) {
    %c0_i32 = arith.constant 0 : i32
    return %arg0, %arg1 : i32, i32
  }
}

</mosaic_0001>

<llo_original>
// kernel: tpu_custom_call.1
$region0: #{tpu_custom_call.1}
  #allocation0 [shape = 'u32[]', space=smem, size = 0x4, offset = 0x4, fixed_abs, tag = 'smem constant byte address 0x4 - core index']
  #allocation1 [shape = 'u32[144,128]{1,0:T(1,128)}', space=vmem, size = 0x12000, scoped, tag = 'internal scratch']
  %s0 = inlined_call_operand.hbm [shape: f32[2,4,256], index: 0, kind: input, shape index: {}]
  %s1 = inlined_call_operand.hbm [shape: f32[2,256], index: 1, kind: output, shape index: {}]
  %s2 = sld [smem:[#allocation0]]
  $region26: #{tpu_custom_call.1} parent=0
    _
  %s4 = ssub.s32 1, %s2
  %s5 = scalar_select 0, %s4, %s2
  $region1: #{tpu_custom_call.1} parent=0
    #allocation2 [shape = 'u8[8192]{0}', space=vmem, size = 0x2000, scoped, tag = 'input window, operand 0, single buffered']
    #allocation3 [shape = 's32[1]{0}', space=sflag, size = 0x4, scoped, tag = 'scoped memory for tpu_custom_call.1']
    #allocation4 [shape = 's32[1]{0}', space=sflag, size = 0x4, scoped, tag = 'scoped memory for tpu_custom_call.1']
    #allocation5 [shape = 'u8[2048]{0}', space=vmem, size = 0x800, scoped, tag = 'output window, operand 0, single buffered']
    %6 = vsyncpa [#allocation3], 0
    %7 = vsyncpa [#allocation4], 0
    // Predicated region
    $region2: #{tpu_custom_call.1} parent=1 // pred_check
      _
    $region3: #{tpu_custom_call.1} parent=1 // pred_check_branch
      %9 = sbr.rel (0) target = $region5
    $region4: #{tpu_custom_call.1} parent=1 // pred_region
      %s11 = ssub.s32 256, 256
      %12 = vsyncadd [#allocation3], %s11
      %s13 = sshll.u32 [#allocation2], 4
      %s14 = int_to_ptr.vmem [resolvable:$true] %s13
      %19 = dma.hbm_to_vmem [thread:$0]  %s0, 256, %s14, [#allocation3], 128, 128, 8
    $region5: #{tpu_custom_call.1} parent=1 // pred_fallthru
      _
    // Predicated region
    $region6: #{tpu_custom_call.1} parent=1 // pred_check
      _
    $region7: #{tpu_custom_call.1} parent=1 // pred_check_branch
      %21 = sbr.rel (0) target = $region9
    $region8: #{tpu_custom_call.1} parent=1 // pred_region
      %22 = dma.done [#allocation3], 256
    $region9: #{tpu_custom_call.1} parent=1 // pred_fallthru
      _
    %v23 = vld [vmem:[#allocation2] sm:$0xff]
    %v24 = vld [vmem:[#allocation2 + $0x8] sm:$0xff]
    %v27 = vcombine.high %v23, %v23
    %v28 = vcombine.high %v24, %v24
    %vm31 = vcmask 1043456
    %v32 = vsel %vm31, %v23, 0.0
    %v33 = vrot.slane %v32, 4
    %v34 = vadd.f32 %v32, %v33
    %v35 = vrot.slane %v34, 2
    %v36 = vadd.f32 %v34, %v35
    %v37 = vrot.slane %v36, 1
    %v38 = vadd.f32 %v36, %v37
    %v39 = vsel %vm31, %v27, 0.0
    %v40 = vrot.slane %v39, 4
    %v41 = vadd.f32 %v39, %v40
    %v42 = vrot.slane %v41, 2
    %v43 = vadd.f32 %v41, %v42
    %v44 = vrot.slane %v43, 1
    %v45 = vadd.f32 %v43, %v44
    %v46 = vsel %vm31, %v24, 0.0
    %v47 = vrot.slane %v46, 4
    %v48 = vadd.f32 %v46, %v47
    %v49 = vrot.slane %v48, 2
    %v50 = vadd.f32 %v48, %v49
    %v51 = vrot.slane %v50, 1
    %v52 = vadd.f32 %v50, %v51
    %v53 = vsel %vm31, %v28, 0.0
    %v54 = vrot.slane %v53, 4
    %v55 = vadd.f32 %v53, %v54
    %v56 = vrot.slane %v55, 2
    %v57 = vadd.f32 %v55, %v56
    %v58 = vrot.slane %v57, 1
    %v59 = vadd.f32 %v57, %v58
    %p60 = scmp.eq.s32.totalorder 0, 0
    // Predicated region
    $region10: #{tpu_custom_call.1} parent=1 // pred_check
      %p61 = pneg %p60
    $region11: #{tpu_custom_call.1} parent=1 // pred_check_branch
      %63 = sbr.rel (%p61) target = $region13
    $region12: #{tpu_custom_call.1} parent=1 // pred_region
      %v68 = vcombine.low %v38, %v45
      %v70 = vunpack.c.l.s4 1983009808
      %v71 = vunpack.c.0.s8 %v70
      %v72 = vlaneseq
      %v73 = vshrl.u32 %v72, 7
      %v74 = vsub.s32 %v71, %v73
      %v75 = vrot.slane %v68, %v74
      %v76 = vcombine.low %v52, %v59
      %v78 = vunpack.c.l.s4 1983009808
      %v79 = vunpack.c.0.s8 %v78
      %v80 = vlaneseq
      %v81 = vshrl.u32 %v80, 7
      %v82 = vsub.s32 %v79, %v81
      %v83 = vrot.slane %v76, %v82
      %vm84 = vcmask 1044484
      %v85 = vsel %vm84, %v75, %v75
      %vm86 = vcmask 1046534
      %v87 = vsel %vm86, %v75, %v85
      %v88 = vrot.slane %v83, 7
      %vm89 = vcmask 1041409
      %v90 = vsel %vm89, %v88, %v87
      %vm91 = vcmask 1043459
      %v92 = vsel %vm91, %v88, %v90
      %vm93 = vcmask 1045509
      %v94 = vsel %vm93, %v88, %v92
      %vm95 = vcmask 1047559
      %v96 = vsel %vm95, %v88, %v94
      %98 = vst [vmem:[#allocation5] sm:$0xf] %v96
    $region13: #{tpu_custom_call.1} parent=1 // pred_fallthru
      _
    %p99 = scmp.ne.s32.totalorder 0, 0
    // Predicated region
    $region14: #{tpu_custom_call.1} parent=1 // pred_check
      %p100 = pneg %p99
    $region15: #{tpu_custom_call.1} parent=1 // pred_check_branch
      %102 = sbr.rel (%p100) target = $region17
    $region16: #{tpu_custom_call.1} parent=1 // pred_region
      %v103 = vld [vmem:[#allocation5] sm:$0xf]
      %v108 = vcombine.low %v38, %v45
      %v110 = vunpack.c.l.s4 1983009808
      %v111 = vunpack.c.0.s8 %v110
      %v112 = vlaneseq
      %v113 = vshrl.u32 %v112, 7
      %v114 = vsub.s32 %v111, %v113
      %v115 = vrot.slane %v108, %v114
      %v116 = vcombine.low %v52, %v59
      %v118 = vunpack.c.l.s4 1983009808
      %v119 = vunpack.c.0.s8 %v118
      %v120 = vlaneseq
      %v121 = vshrl.u32 %v120, 7
      %v122 = vsub.s32 %v119, %v121
      %v123 = vrot.slane %v116, %v122
      %vm124 = vcmask 1044484
      %v125 = vsel %vm124, %v115, %v115
      %vm126 = vcmask 1046534
      %v127 = vsel %vm126, %v115, %v125
      %v128 = vrot.slane %v123, 7
      %vm129 = vcmask 1041409
      %v130 = vsel %vm129, %v128, %v127
      %vm131 = vcmask 1043459
      %v132 = vsel %vm131, %v128, %v130
      %vm133 = vcmask 1045509
      %v134 = vsel %vm133, %v128, %v132
      %vm135 = vcmask 1047559
      %v136 = vsel %vm135, %v128, %v134
      %v138 = vadd.f32 %v103, %v136
      %139 = vst [vmem:[#allocation5] sm:$0xf] %v138
    $region17: #{tpu_custom_call.1} parent=1 // pred_fallthru
      _
    // Predicated region
    $region18: #{tpu_custom_call.1} parent=1 // pred_check
      _
    $region19: #{tpu_custom_call.1} parent=1 // pred_check_branch
      %141 = sbr.rel (0) target = $region21
    $region20: #{tpu_custom_call.1} parent=1 // pred_region
      %s143 = ssub.s32 64, 64
      %144 = vsyncadd [#allocation4], %s143
      %s146 = sshll.u32 [#allocation5], 4
      %s147 = int_to_ptr.vmem [resolvable:$true] %s146
      %149 = dma.vmem_to_hbm [thread:$0]  %s147, 64, %s1, [#allocation4]
    $region21: #{tpu_custom_call.1} parent=1 // pred_fallthru
      _
    // Predicated region
    $region22: #{tpu_custom_call.1} parent=1 // pred_check
      _
    $region23: #{tpu_custom_call.1} parent=1 // pred_check_branch
      %151 = sbr.rel (0) target = $region25
    $region24: #{tpu_custom_call.1} parent=1 // pred_region
      %152 = dma.done [#allocation4], 64
    $region25: #{tpu_custom_call.1} parent=1 // pred_fallthru
      _
    %153 = vsyncpa [#allocation3], 1
    %154 = vsyncpa [#allocation4], 1

</llo_original>
